<compile_context>
chip_gen: v7x
topology: tpu7x:2x2x1
jax: 0.10.0
libtpu: 0.0.40
codegen_flags: <defaults>
</compile_context>

<pallas_src>
import jax
import jax.numpy as jnp
from jax.experimental import pallas as pl
from jax.experimental.pallas import tpu as pltpu


def _round_up(n: int, m: int) -> int:
    return ((n + m - 1) // m) * m


def _vmem_capacity_bytes() -> int:
    """Per-TensorCore VMEM capacity; conservative (v7x, 64 MiB) if unknown."""
    try:
        info = pltpu.get_tpu_info()
        cap = getattr(info, "vmem_capacity_bytes", None)
        if cap:
            return int(cap)
    except Exception:
        pass
    return 64 * 1024 * 1024


# ---------------------------------------------------------------------------
# output_dim == 1 kernel: VPU multiply + XLU lane reduce, no MXU, scalar bias
# from SMEM, lane-dense (1, TB) output block. x arrives in its native dtype
# and is cast in-kernel (free VPU work, no extra HBM traffic).
# ---------------------------------------------------------------------------
def _linear_o1_kernel(x_ref, w_ref, b_ref, o_ref):
    x = x_ref[...].astype(jnp.float32)          # (TB, D) native dtype -> f32
    w = w_ref[...]                              # (1, D) f32, grid-invariant
    s = jnp.sum(x * w, axis=1)                  # VPU mul + XLU lane reduce -> (TB,)
    y = s + b_ref[0]                            # scalar bias from SMEM
    # TODO(synk): for D << 128 a (B, D)->(B//f, 128) fold with a block-diagonal
    # weight would give dense lanes and drop this sublane->lane relayout; the
    # wrapper budget only accounts for the lane padding instead.
    o_ref[...] = y.reshape(1, -1).astype(o_ref.dtype)   # lane-dense store


# ---------------------------------------------------------------------------
# General-O kernel: MXU matmul in native (M,K)x(K,N) orientation (wrapper
# passes W^T), f32 accumulation, bias added on the VPU.
# ---------------------------------------------------------------------------
def _linear_mxu_kernel(x_ref, wt_ref, b_ref, o_ref):
    x = x_ref[...].astype(jnp.float32)
    acc = jnp.dot(x, wt_ref[...], preferred_element_type=jnp.float32)   # (TB, O)
    o_ref[...] = (acc + b_ref[...]).astype(o_ref.dtype)
    # TODO(synk): if D/O ever scale up, feed x/w as bfloat16 (keep f32
    # accumulation) on v6e/v7x for full MXU rate and half the HBM/VMEM traffic.


def logistic_regression_forward(x, w, b):
    """Pallas forward for nn.Linear: x (B, D), w (O, D), b (O,) -> (B, O)."""
    B, D = x.shape
    O = w.shape[0]
    out_dtype = x.dtype
    w = w.astype(jnp.float32)                   # tiny, one-time
    b = b.astype(jnp.float32)

    # --- generation-aware VMEM budget ---------------------------------------
    vmem_cap = _vmem_capacity_bytes()
    if vmem_cap >= 100 * 1024 * 1024:           # v5e / v6e: 128 MiB VMEM per TC
        vmem_block_budget = 16 * 1024 * 1024    # per x block (double-buffered)
        vmem_limit = 64 * 1024 * 1024
    else:                                       # v7x: 64 MiB VMEM per TC
        vmem_block_budget = 8 * 1024 * 1024
        vmem_limit = 32 * 1024 * 1024

    # --- batch tile ----------------------------------------------------------
    # VMEM-resident row size includes lane padding of the last dim to 128.
    bytes_per_row = _round_up(D, 128) * x.dtype.itemsize
    tb_budget = max(128, (vmem_block_budget // bytes_per_row) // 128 * 128)
    if B <= 256:
        TB = B                                  # single full-array block
    else:
        # >=2 grid steps so the "parallel" batch axis shards over v7x's 2 TCs.
        tb_half = max(128, (B // 2) // 128 * 128)
        TB = min(tb_budget, tb_half)
    grid = (pl.cdiv(B, TB),)
    # TODO(synk): add a D (reduction) grid axis + f32 VMEM accumulator if D
    # ever grows so large that a single (TB, D) block no longer fits the limit.

    itemsize = x.dtype.itemsize
    cost = pl.CostEstimate(
        flops=2 * B * D * O,
        bytes_accessed=itemsize * B * D + 4 * O * (D + 1) + itemsize * B * O,
        transcendentals=0,
    )
    cparams = pltpu.CompilerParams(
        dimension_semantics=("parallel",),
        vmem_limit_bytes=vmem_limit,
    )

    if O == 1:
        out = pl.pallas_call(
            _linear_o1_kernel,
            grid=grid,
            out_shape=jax.ShapeDtypeStruct((1, B), out_dtype),
            in_specs=[
                pl.BlockSpec((TB, D), lambda i: (i, 0)),              # x tile (native dtype)
                pl.BlockSpec((1, D), lambda i: (0, 0)),               # weight row (grid-invariant)
                pl.BlockSpec(memory_space=pltpu.MemorySpace.SMEM),    # bias scalar in SMEM
            ],
            out_specs=pl.BlockSpec((1, TB), lambda i: (0, i)),        # lane-dense output
            compiler_params=cparams,
            cost_estimate=cost,
        )(x, w, b)
        # (1, B) -> (B, 1): contiguous reshape, no transpose.
        return out[0].reshape(B, 1)

    w_t = w.T                                   # (D, O), one-time tiny transpose
    out = pl.pallas_call(
        _linear_mxu_kernel,
        grid=grid,
        out_shape=jax.ShapeDtypeStruct((B, O), out_dtype),
        in_specs=[
            pl.BlockSpec((TB, D), lambda i: (i, 0)),
            pl.BlockSpec((D, O), lambda i: (0, 0)),                   # W^T, grid-invariant
            pl.BlockSpec((1, O), lambda i: (0, 0)),
        ],
        out_specs=pl.BlockSpec((TB, O), lambda i: (i, 0)),
        compiler_params=cparams,
        cost_estimate=cost,
    )(x, w_t, b.reshape(1, O))
    return out


if __name__ == "__main__":
    key = jax.random.PRNGKey(0)
    kx, kw, kb = jax.random.split(key, 3)

    # Shapes consistent with the module: batch=8, input_dim=32, output_dim=1.
    batch, input_dim, output_dim = 8, 32, 1
    bound = 1.0 / (input_dim ** 0.5)    # mimic nn.Linear's U(-1/sqrt(D), 1/sqrt(D))
    w = jax.random.uniform(kw, (output_dim, input_dim), jnp.float32, -bound, bound)
    b = jax.random.uniform(kb, (output_dim,), jnp.float32, -bound, bound)
    x = jax.random.normal(kx, (batch, input_dim), jnp.float32)

    y = jax.block_until_ready(logistic_regression_forward(x, w, b))
    y_ref = x @ w.T + b
    assert y.shape == (batch, output_dim)
    assert jnp.allclose(y, y_ref, atol=1e-5), "O==1 single-tile mismatch"

    # Extra sanity: ragged multi-tile batch (cdiv grid + masked tail block).
    x2 = jax.random.normal(kx, (300, input_dim), jnp.float32)
    y2 = jax.block_until_ready(logistic_regression_forward(x2, w, b))
    assert jnp.allclose(y2, x2 @ w.T + b, atol=1e-5), "O==1 multi-tile mismatch"

    # Extra sanity: general-O MXU path with W^T orientation.
    w8 = jax.random.uniform(kw, (8, input_dim), jnp.float32, -bound, bound)
    b8 = jax.random.uniform(kb, (8,), jnp.float32, -bound, bound)
    y3 = jax.block_until_ready(logistic_regression_forward(x2, w8, b8))
    assert jnp.allclose(y3, x2 @ w8.T + b8, atol=1e-4), "general-O mismatch"

    print("KERNEL_OK")
</pallas_src>

<mosaic_0001>
module attributes {stable_mosaic.version = 11 : i64} {
  func.func @_linear_o1_kernel(%arg0: i32, %arg1: memref<8x32xf32, #tpu.memory_space<vmem>>, %arg2: memref<1x32xf32, #tpu.memory_space<vmem>>, %arg3: memref<1xf32, #tpu.memory_space<smem>>, %arg4: memref<1x8xf32, #tpu.memory_space<vmem>>) attributes {dimension_semantics = [#tpu.dimension_semantics<parallel>], iteration_bounds = array<i64: 1>, scalar_prefetch = 0 : i64, scratch_operands = 0 : i64, tpu.core_type = #tpu.core_type<tc>, window_params = [{transform_indices = @transform_0, window_bounds = array<i64: 8, 32>}, {pipeline_mode = #tpu.pipeline_mode<synchronous>, transform_indices = @transform_1, window_bounds = array<i64: 1, 32>}, {transform_indices = @transform_2, window_bounds = array<i64: 1>}, {transform_indices = @transform_3, window_bounds = array<i64: 1, 8>}]} {
    %c0 = arith.constant 0 : index
    %c0_0 = arith.constant 0 : index
    %0 = vector.load %arg1[%c0, %c0_0] : memref<8x32xf32, #tpu.memory_space<vmem>>, vector<8x32xf32>
    %c0_1 = arith.constant 0 : index
    %c0_2 = arith.constant 0 : index
    %1 = vector.load %arg2[%c0_1, %c0_2] : memref<1x32xf32, #tpu.memory_space<vmem>>, vector<1x32xf32>
    %2 = vector.broadcast %1 : vector<1x32xf32> to vector<8x32xf32>
    %3 = arith.mulf %0, %2 : vector<8x32xf32>
    %cst = arith.constant dense<0.000000e+00> : vector<8xf32>
    %4 = vector.multi_reduction <add>, %3, %cst [1] : vector<8x32xf32> to vector<8xf32>
    %c0_3 = arith.constant 0 : index
    %5 = memref.load %arg3[%c0_3] : memref<1xf32, #tpu.memory_space<smem>>
    %6 = vector.broadcast %5 : f32 to vector<8xf32>
    %7 = arith.addf %4, %6 : vector<8xf32>
    %8 = vector.shape_cast %7 : vector<8xf32> to vector<1x8xf32>
    %c0_4 = arith.constant 0 : index
    %c0_5 = arith.constant 0 : index
    %9 = vector.load %arg4[%c0_4, %c0_5] : memref<1x8xf32, #tpu.memory_space<vmem>>, vector<1x8xf32>
    tpu.vector_store %arg4[%c0_4, %c0_5], %8 {strides = array<i32>} : memref<1x8xf32, #tpu.memory_space<vmem>>, vector<1x8xf32>,
    return
  }
  func.func @transform_0(%arg0: i32) -> (i32, i32) {
    %c0_i32 = arith.constant 0 : i32
    %c0_i32_0 = arith.constant 0 : i32
    return %arg0, %c0_i32 : i32, i32
  }
  func.func @transform_1(%arg0: i32) -> (i32, i32) {
    %c0_i32 = arith.constant 0 : i32
    %c0_i32_0 = arith.constant 0 : i32
    %c0_i32_1 = arith.constant 0 : i32
    return %c0_i32, %c0_i32_0 : i32, i32
  }
  func.func @transform_2(%arg0: i32) -> i32 {
    %c0_i32 = arith.constant 0 : i32
    %c0_i32_0 = arith.constant 0 : i32
    return %c0_i32 : i32
  }
  func.func @transform_3(%arg0: i32) -> (i32, i32) {
    %c0_i32 = arith.constant 0 : i32
    %c0_i32_0 = arith.constant 0 : i32
    return %c0_i32, %arg0 : i32, i32
  }
}

</mosaic_0001>

<llo_original>
// kernel: tpu_custom_call.1
$region0: #{tpu_custom_call.1}
  #allocation0 [shape = 'u32[]', space=smem, size = 0x4, offset = 0x4, fixed_abs, tag = 'smem constant byte address 0x4 - core index']
  #allocation1 [shape = 'u32[144,128]{1,0:T(1,128)}', space=vmem, size = 0x12000, scoped, tag = 'internal scratch']
  #allocation2 [shape = 'f32[1]{0:T(128)S(6)}', space=smem, size = 0x200, scoped, tag = 'scoped memory for tpu_custom_call.1']
  %s0 = inlined_call_operand.hbm [shape: f32[8,32], index: 0, kind: input, shape index: {}]
  %s1 = inlined_call_operand.vmem [shape: f32[1,32], index: 1, kind: input, shape index: {}]
  %s2 = inlined_call_operand.<no memory space> [shape: f32[1], index: 2, kind: input, shape index: {}]
  %s3 = inlined_call_operand.hbm [shape: f32[1,8], index: 3, kind: output, shape index: {}]
  %s4 = sld [smem:[#allocation0]]
  $region26: #{tpu_custom_call.1} parent=0
    _
  %s6 = ssub.s32 1, %s4
  %s7 = scalar_select 0, %s6, %s4
  %8 = sst [smem:[#allocation2]] %s2
  $region1: #{tpu_custom_call.1} parent=0
    #allocation3 [shape = 'u8[4096]{0}', space=vmem, size = 0x1000, scoped, tag = 'input window, operand 0, single buffered']
    #allocation4 [shape = 's32[1]{0}', space=sflag, size = 0x4, scoped, tag = 'scoped memory for tpu_custom_call.1']
    #allocation5 [shape = 's32[1]{0}', space=sflag, size = 0x4, scoped, tag = 'scoped memory for tpu_custom_call.1']
    #allocation6 [shape = 'u8[512]{0}', space=vmem, size = 0x400, scoped, tag = 'output window, operand 0, single buffered']
    %9 = vsyncpa [#allocation4], 0
    %10 = vsyncpa [#allocation5], 0
    // Predicated region
    $region2: #{tpu_custom_call.1} parent=1 // pred_check
      _
    $region3: #{tpu_custom_call.1} parent=1 // pred_check_branch
      %12 = sbr.rel (0) target = $region5
    $region4: #{tpu_custom_call.1} parent=1 // pred_region
      %s14 = ssub.s32 128, 128
      %15 = vsyncadd [#allocation4], %s14
      %s17 = sshll.u32 [#allocation3], 4
      %s18 = int_to_ptr.vmem [resolvable:$true] %s17
      %20 = dma.hbm_to_vmem [thread:$0]  %s0, 128, %s18, [#allocation4]
    $region5: #{tpu_custom_call.1} parent=1 // pred_fallthru
      _
    // Predicated region
    $region6: #{tpu_custom_call.1} parent=1 // pred_check
      _
    $region7: #{tpu_custom_call.1} parent=1 // pred_check_branch
      %22 = sbr.rel (0) target = $region9
    $region8: #{tpu_custom_call.1} parent=1 // pred_region
      _
    $region9: #{tpu_custom_call.1} parent=1 // pred_fallthru
      _
    // Predicated region
    $region10: #{tpu_custom_call.1} parent=1 // pred_check
      _
    $region11: #{tpu_custom_call.1} parent=1 // pred_check_branch
      %24 = sbr.rel (0) target = $region13
    $region12: #{tpu_custom_call.1} parent=1 // pred_region
      _
    $region13: #{tpu_custom_call.1} parent=1 // pred_fallthru
      _
    // Predicated region
    $region14: #{tpu_custom_call.1} parent=1 // pred_check
      _
    $region15: #{tpu_custom_call.1} parent=1 // pred_check_branch
      %26 = sbr.rel (0) target = $region17
    $region16: #{tpu_custom_call.1} parent=1 // pred_region
      %27 = dma.done [#allocation4], 128
    $region17: #{tpu_custom_call.1} parent=1 // pred_fallthru
      _
    %v28 = vld [vmem:[#allocation3] sm:$0xff]
    %v29 = vld [vmem:[%s1] sm:$0x1]
    %v31 = vlaneseq
    %v32 = vshrl.u32 %v31, 7
    %v33 = vsub.s32 0, %v32
    %v34 = vrot.slane %v29, %v33
    %v36 = vmul.f32 %v28, %v34
    %vm37 = vcmask 261120
    %v38 = vsel %vm37, %v36, 0.0
    %39 = vadd.xlane.f32.xlu0 %v38
    %v40 = vpop.xlane.xlu0 %39
    %s41 = sld [smem:[#allocation2]]
    %v42 = vstv %s41
    %v43 = vadd.f32 %v40, %v42
    %v45 = vlaneseq
    %v46 = vand.u32 %v45, 127
    %v47 = vlaneseq
    %v48 = vshrl.u32 %v47, 7
    %v49 = vsub.s32 %v46, %v48
    %v50 = vrot.slane %v43, %v49
    %vm52 = vcmask 57344
    %53 = vst.msk [vmem:[#allocation6] sm:$0x1] %vm52, %v50
    // Predicated region
    $region18: #{tpu_custom_call.1} parent=1 // pred_check
      _
    $region19: #{tpu_custom_call.1} parent=1 // pred_check_branch
      %55 = sbr.rel (0) target = $region21
    $region20: #{tpu_custom_call.1} parent=1 // pred_region
      %s57 = ssub.s32 16, 16
      %58 = vsyncadd [#allocation5], %s57
      %s60 = sshll.u32 [#allocation6], 4
      %s61 = int_to_ptr.vmem [resolvable:$true] %s60
      %63 = dma.vmem_to_hbm [thread:$0]  %s61, 16, %s3, [#allocation5]
    $region21: #{tpu_custom_call.1} parent=1 // pred_fallthru
      _
    // Predicated region
    $region22: #{tpu_custom_call.1} parent=1 // pred_check
      _
    $region23: #{tpu_custom_call.1} parent=1 // pred_check_branch
      %65 = sbr.rel (0) target = $region25
    $region24: #{tpu_custom_call.1} parent=1 // pred_region
      %66 = dma.done [#allocation5], 16
    $region25: #{tpu_custom_call.1} parent=1 // pred_fallthru
      _
    %67 = vsyncpa [#allocation4], 1
    %68 = vsyncpa [#allocation5], 1

</llo_original>
